<compile_context>
chip_gen: v5e
topology: v5e:2x2
jax: 0.10.0
libtpu: 0.0.40
codegen_flags: <defaults>
</compile_context>

<pallas_src>
import functools

import jax
import jax.numpy as jnp
from jax import lax
from jax.experimental import pallas as pl
from jax.experimental.pallas import tpu as pltpu
import numpy as np

EPS = 1e-6

# Tap order k = (dy+1)*3 + (dx+1); k == 4 is the (always valid) center tap.
_TAPS = [(dy, dx) for dy in (-1, 0, 1) for dx in (-1, 0, 1)]


def _erf(x):
    # Abramowitz & Stegun 7.1.26 (max abs err ~1.5e-7) -- only exp/mul/add/
    # select plus one EUP reciprocal, all of which lower on TPU.
    a1, a2, a3, a4, a5 = 0.254829592, -0.284496736, 1.421413741, -1.453152027, 1.061405429
    p = 0.3275911
    ax = jnp.abs(x)
    t = pl.reciprocal(1.0 + p * ax, approx=True)      # EUP slot (effectively free)
    poly = ((((a5 * t + a4) * t + a3) * t + a2) * t + a1) * t
    y = 1.0 - poly * jnp.exp(-ax * ax)
    return jnp.where(x >= 0, y, -y)


def _gelu(x):
    # nn.GELU() default = exact (erf-based) GELU
    return 0.5 * x * (1.0 + _erf(x * 0.7071067811865476))


def mlp_kernel(x_ref, w1_ref, b1_ref, wmask_ref, posb_ref, w2_ref, b2_ref,
               o_ref, *, W):
    x = x_ref[0]                                   # (C, PL): channels on sublanes, spatial (x batch) on lanes
    C, PL = x.shape
    inv_c = 1.0 / C

    # ---- LayerNorm (channels_first): reduce over the tiny C axis (XLU) -------
    u = jnp.sum(x, axis=0, keepdims=True) * inv_c              # (1, PL)
    xc = x - u
    s = jnp.sum(xc * xc, axis=0, keepdims=True) * inv_c        # biased variance
    xn = xc * lax.rsqrt(s + EPS)                               # gamma/beta folded into fc1

    # ---- fc1 (1x1 conv, LN affine folded in) on the MXU + exact GELU --------
    h = jnp.dot(w1_ref[...], xn, preferred_element_type=jnp.float32) + b1_ref[...]   # (HC, PL)
    h = _gelu(h)

    # ---- depthwise 3x3 conv, padding=1: 8 masked lane-rolls + 9 VPU FMAs ----
    # neighbor of flat position p at (i+dy, j+dx) lives at p + dy*W + dx; taps
    # whose neighbor falls outside the image are pre-zeroed in wmask, which
    # also neutralizes roll wrap-around across image / batch boundaries.
    conv = posb_ref[...] + wmask_ref[4] * h                    # center tap
    for k, (dy, dx) in enumerate(_TAPS):
        if dy == 0 and dx == 0:
            continue
        d = dy * W + dx
        shifted = pltpu.roll(h, shift=(-d) % PL, axis=1)       # out[p] = h[p + d]
        conv = conv + wmask_ref[k] * shifted
    h = h + _gelu(conv)

    # ---- fc2 (1x1 conv) on the MXU -------------------------------------------
    o_ref[0] = jnp.dot(w2_ref[...], h, preferred_element_type=jnp.float32) + b2_ref[...]


def _build_tap_masks(H, W):
    """(9, H*W) float32: masks[k, p] = 1 iff the (dy,dx)=(k//3-1, k%3-1)
    neighbour of flat position p exists under zero padding (padding=1)."""
    i, j = np.meshgrid(np.arange(H), np.arange(W), indexing="ij")
    i = i.reshape(-1)
    j = j.reshape(-1)
    masks = []
    for dy in (-1, 0, 1):
        for dx in (-1, 0, 1):
            valid = (i + dy >= 0) & (i + dy < H) & (j + dx >= 0) & (j + dx < W)
            masks.append(valid.astype(np.float32))
    return np.stack(masks, axis=0)                             # (9, P)


def mlp_forward(x_nchw, params, *, max_grid_steps=2):
    N, C, H, W = x_nchw.shape
    P = H * W
    HC = params["w1"].shape[0]

    # Batch tiling: fold batch elements onto the lane axis, keeping at most
    # `max_grid_steps` grid steps.  Default 2 keeps both v7x TensorCores busy;
    # pass max_grid_steps=1 on single-TC v5e/v6e to amortize per-step overhead.
    g = max(1, min(max_grid_steps, N))
    while N % g != 0:
        g -= 1
    b_tile = N // g
    PL = b_tile * P

    # NCHW -> (G, C, B_TILE*P): spatial (and folded batch) land on lanes.
    x = x_nchw.reshape(N, C, P).astype(jnp.float32)
    if b_tile > 1:
        x = x.reshape(g, b_tile, C, P).transpose(0, 2, 1, 3).reshape(g, C, PL)
    else:
        x = x.reshape(g, C, PL)

    # --- fold LayerNorm affine into fc1 (exact): fc1(g*xn+b) = (w1*g)xn + (b1 + w1@b)
    ln_w = params["ln_w"].astype(jnp.float32)                  # (C,)
    ln_b = params["ln_b"].astype(jnp.float32)                  # (C,)
    w1 = params["w1"].astype(jnp.float32)                      # (HC, C)
    w1f = w1 * ln_w[None, :]                                   # (HC, C)
    b1f = (params["b1"].astype(jnp.float32) + w1 @ ln_b).reshape(HC, 1)

    # --- depthwise taps pre-multiplied by the zero-padding validity masks
    wpos = params["wpos"].reshape(HC, 9).T.astype(jnp.float32)  # (9, HC), k=(dy+1)*3+(dx+1)
    masks = _build_tap_masks(H, W)                               # (9, P)
    wmask = wpos[:, :, None] * masks[:, None, :]                 # (9, HC, P)
    if b_tile > 1:
        wmask = jnp.tile(wmask, (1, 1, b_tile))                  # (9, HC, PL)
    posb = params["posb"].reshape(HC, 1).astype(jnp.float32)

    w2 = params["w2"].astype(jnp.float32)                        # (C, HC)
    b2 = params["b2"].reshape(C, 1).astype(jnp.float32)

    kernel = functools.partial(mlp_kernel, W=W)

    def const(shape):
        # Constant index_map: weight tiles stay VMEM-resident across the grid.
        return pl.BlockSpec(shape, lambda b, _n=len(shape): (0,) * _n)

    out = pl.pallas_call(
        kernel,
        out_shape=jax.ShapeDtypeStruct((g, C, PL), jnp.float32),
        grid=(g,),
        in_specs=[
            pl.BlockSpec((1, C, PL), lambda b: (b, 0, 0)),        # activations
            const((HC, C)), const((HC, 1)),                       # fc1 (LN folded) weight / bias
            const((9, HC, PL)), const((HC, 1)),                   # masked depthwise taps / bias
            const((C, HC)), const((C, 1)),                        # fc2 weight / bias
        ],
        out_specs=pl.BlockSpec((1, C, PL), lambda b: (b, 0, 0)),
        compiler_params=pltpu.CompilerParams(dimension_semantics=("parallel",)),
    )(x, w1f, b1f, wmask, posb, w2, b2)

    if b_tile > 1:
        out = out.reshape(g, C, b_tile, P).transpose(0, 2, 1, 3).reshape(N, C, P)
    else:
        out = out.reshape(N, C, P)
    return out.reshape(N, C, H, W)


def mlp_reference(x, params):
    """Pure-JAX reference matching the PyTorch forward (x is NCHW)."""
    HC = params["w1"].shape[0]
    u = jnp.mean(x, axis=1, keepdims=True)
    s = jnp.mean((x - u) ** 2, axis=1, keepdims=True)
    xn = (x - u) / jnp.sqrt(s + EPS)
    xn = params["ln_w"].reshape(1, -1, 1, 1) * xn + params["ln_b"].reshape(1, -1, 1, 1)

    h = jnp.einsum("nchw,oc->nohw", xn, params["w1"],
                   precision="highest") + params["b1"].reshape(1, -1, 1, 1)
    h = jax.nn.gelu(h, approximate=False)

    wdw = params["wpos"][:, None, :, :]                           # (HC, 1, 3, 3)
    conv = lax.conv_general_dilated(
        h, wdw, window_strides=(1, 1), padding=((1, 1), (1, 1)),
        feature_group_count=HC, dimension_numbers=("NCHW", "OIHW", "NCHW"),
        precision=lax.Precision.HIGHEST)
    conv = conv + params["posb"].reshape(1, -1, 1, 1)
    h = h + jax.nn.gelu(conv, approximate=False)

    out = jnp.einsum("nchw,oc->nohw", h, params["w2"],
                     precision="highest") + params["b2"].reshape(1, -1, 1, 1)
    return out


if __name__ == "__main__":
    dim, mlp_ratio = 4, 4
    HC = dim * mlp_ratio
    N, H, W = 2, 16, 16

    key = jax.random.PRNGKey(0)
    kx, k0, k1, k2, k3, k4, k5, k6, k7 = jax.random.split(key, 9)

    x = jax.random.normal(kx, (N, dim, H, W), dtype=jnp.float32)

    params = {
        "ln_w": 1.0 + 0.1 * jax.random.normal(k6, (dim,), dtype=jnp.float32),
        "ln_b": 0.1 * jax.random.normal(k7, (dim,), dtype=jnp.float32),
        # fc1: Conv2d(dim, dim*4, 1) -> weight (HC, C), bias (HC,)
        "w1": 0.1 * jax.random.normal(k0, (HC, dim), dtype=jnp.float32),
        "b1": 0.1 * jax.random.normal(k1, (HC,), dtype=jnp.float32),
        # pos: depthwise Conv2d(dim*4, dim*4, 3, padding=1, groups=dim*4) -> (HC, 3, 3)
        "wpos": 0.1 * jax.random.normal(k2, (HC, 3, 3), dtype=jnp.float32),
        "posb": 0.1 * jax.random.normal(k3, (HC,), dtype=jnp.float32),
        # fc2: Conv2d(dim*4, dim, 1) -> weight (C, HC), bias (C,)
        "w2": 0.1 * jax.random.normal(k4, (dim, HC), dtype=jnp.float32),
        "b2": 0.1 * jax.random.normal(k5, (dim,), dtype=jnp.float32),
    }

    y_ref = mlp_reference(x, params)

    # Tolerance leaves headroom for the approx EUP reciprocal in erf and any
    # MXU rounding on the tiny f32 matmuls; real bugs show up as O(0.1) errors.
    TOL = dict(rtol=3e-3, atol=3e-3)

    # Config 1 (default): one batch element per grid step, grid=(2,) parallel
    # -> both v7x TensorCores get work.
    y = mlp_forward(x, params)
    jax.block_until_ready(y)
    assert y.shape == x.shape, (y.shape, x.shape)
    np.testing.assert_allclose(np.asarray(y), np.asarray(y_ref), **TOL)

    # Config 2: whole batch folded onto the lane axis, single wide grid step
    # (preferred on single-TensorCore v5e / v6e; masks neutralize wrap-around).
    y1 = mlp_forward(x, params, max_grid_steps=1)
    jax.block_until_ready(y1)
    np.testing.assert_allclose(np.asarray(y1), np.asarray(y_ref), **TOL)

    print("KERNEL_OK")
</pallas_src>

<mosaic_0001>
module attributes {stable_mosaic.version = 11 : i64} {
  func.func @mlp_kernel(%arg0: i32, %arg1: memref<1x4x256xf32, #tpu.memory_space<vmem>>, %arg2: memref<16x4xf32, #tpu.memory_space<vmem>>, %arg3: memref<16x1xf32, #tpu.memory_space<vmem>>, %arg4: memref<9x16x256xf32, #tpu.memory_space<vmem>>, %arg5: memref<16x1xf32, #tpu.memory_space<vmem>>, %arg6: memref<4x16xf32, #tpu.memory_space<vmem>>, %arg7: memref<4x1xf32, #tpu.memory_space<vmem>>, %arg8: memref<1x4x256xf32, #tpu.memory_space<vmem>>) attributes {dimension_semantics = [#tpu.dimension_semantics<parallel>], iteration_bounds = array<i64: 2>, scalar_prefetch = 0 : i64, scratch_operands = 0 : i64, tpu.core_type = #tpu.core_type<tc>, window_params = [{transform_indices = @transform_0, window_bounds = array<i64: 1, 4, 256>}, {pipeline_mode = #tpu.pipeline_mode<synchronous>, transform_indices = @transform_1, window_bounds = array<i64: 16, 4>}, {pipeline_mode = #tpu.pipeline_mode<synchronous>, transform_indices = @transform_2, window_bounds = array<i64: 16, 1>}, {pipeline_mode = #tpu.pipeline_mode<synchronous>, transform_indices = @transform_3, window_bounds = array<i64: 9, 16, 256>}, {pipeline_mode = #tpu.pipeline_mode<synchronous>, transform_indices = @transform_4, window_bounds = array<i64: 16, 1>}, {pipeline_mode = #tpu.pipeline_mode<synchronous>, transform_indices = @transform_5, window_bounds = array<i64: 4, 16>}, {pipeline_mode = #tpu.pipeline_mode<synchronous>, transform_indices = @transform_6, window_bounds = array<i64: 4, 1>}, {transform_indices = @transform_7, window_bounds = array<i64: 1, 4, 256>}]} {
    %c0 = arith.constant 0 : index
    %c0_0 = arith.constant 0 : index
    %c0_1 = arith.constant 0 : index
    %0 = vector.load %arg1[%c0, %c0_0, %c0_1] : memref<1x4x256xf32, #tpu.memory_space<vmem>>, vector<1x4x256xf32>
    %1 = vector.shape_cast %0 : vector<1x4x256xf32> to vector<4x256xf32>
    %cst = arith.constant dense<0.000000e+00> : vector<256xf32>
    %2 = vector.multi_reduction <add>, %1, %cst [0] : vector<4x256xf32> to vector<256xf32>
    %3 = vector.shape_cast %2 : vector<256xf32> to vector<1x256xf32>
    %cst_2 = arith.constant 2.500000e-01 : f32
    %4 = vector.broadcast %cst_2 : f32 to vector<1x256xf32>
    %5 = arith.mulf %3, %4 : vector<1x256xf32>
    %6 = vector.broadcast %5 : vector<1x256xf32> to vector<4x256xf32>
    %7 = arith.subf %1, %6 : vector<4x256xf32>
    %8 = arith.mulf %7, %7 : vector<4x256xf32>
    %cst_3 = arith.constant dense<0.000000e+00> : vector<256xf32>
    %9 = vector.multi_reduction <add>, %8, %cst_3 [0] : vector<4x256xf32> to vector<256xf32>
    %10 = vector.shape_cast %9 : vector<256xf32> to vector<1x256xf32>
    %cst_4 = arith.constant 2.500000e-01 : f32
    %11 = vector.broadcast %cst_4 : f32 to vector<1x256xf32>
    %12 = arith.mulf %10, %11 : vector<1x256xf32>
    %cst_5 = arith.constant 9.99999997E-7 : f32
    %13 = vector.broadcast %cst_5 : f32 to vector<1x256xf32>
    %14 = arith.addf %12, %13 : vector<1x256xf32>
    %15 = math.rsqrt %14 : vector<1x256xf32>
    %16 = vector.broadcast %15 : vector<1x256xf32> to vector<4x256xf32>
    %17 = arith.mulf %7, %16 : vector<4x256xf32>
    %c0_6 = arith.constant 0 : index
    %c0_7 = arith.constant 0 : index
    %18 = vector.load %arg2[%c0_6, %c0_7] : memref<16x4xf32, #tpu.memory_space<vmem>>, vector<16x4xf32>
    %cst_8 = arith.constant dense<0.000000e+00> : vector<16x256xf32>
    %19 = tpu.matmul %18, %17, %cst_8 {dimension_numbers = #tpu.dot_dimension_numbers<[1], [0], [0], [1], [0, 0, 1, 1], [], []>} : vector<16x4xf32>, vector<4x256xf32>, vector<16x256xf32> -> vector<16x256xf32>
    %c0_9 = arith.constant 0 : index
    %c0_10 = arith.constant 0 : index
    %20 = vector.load %arg3[%c0_9, %c0_10] : memref<16x1xf32, #tpu.memory_space<vmem>>, vector<16x1xf32>
    %21 = vector.broadcast %20 : vector<16x1xf32> to vector<16x256xf32>
    %22 = arith.addf %19, %21 : vector<16x256xf32>
    %cst_11 = arith.constant 5.000000e-01 : f32
    %23 = vector.broadcast %cst_11 : f32 to vector<16x256xf32>
    %24 = arith.mulf %23, %22 : vector<16x256xf32>
    %cst_12 = arith.constant 0.707106769 : f32
    %25 = vector.broadcast %cst_12 : f32 to vector<16x256xf32>
    %26 = arith.mulf %22, %25 : vector<16x256xf32>
    %27 = math.absf %26 : vector<16x256xf32>
    %cst_13 = arith.constant 0.327591091 : f32
    %28 = vector.broadcast %cst_13 : f32 to vector<16x256xf32>
    %29 = arith.mulf %28, %27 : vector<16x256xf32>
    %cst_14 = arith.constant 1.000000e+00 : f32
    %30 = vector.broadcast %cst_14 : f32 to vector<16x256xf32>
    %31 = arith.addf %30, %29 : vector<16x256xf32>
    %32 = tpu.reciprocal %31 {approx = true} : vector<16x256xf32> -> vector<16x256xf32>
    %cst_15 = arith.constant 1.06140542 : f32
    %33 = vector.broadcast %cst_15 : f32 to vector<16x256xf32>
    %34 = arith.mulf %33, %32 : vector<16x256xf32>
    %cst_16 = arith.constant -1.45315206 : f32
    %35 = vector.broadcast %cst_16 : f32 to vector<16x256xf32>
    %36 = arith.addf %34, %35 : vector<16x256xf32>
    %37 = arith.mulf %36, %32 : vector<16x256xf32>
    %cst_17 = arith.constant 1.42141378 : f32
    %38 = vector.broadcast %cst_17 : f32 to vector<16x256xf32>
    %39 = arith.addf %37, %38 : vector<16x256xf32>
    %40 = arith.mulf %39, %32 : vector<16x256xf32>
    %cst_18 = arith.constant -0.284496725 : f32
    %41 = vector.broadcast %cst_18 : f32 to vector<16x256xf32>
    %42 = arith.addf %40, %41 : vector<16x256xf32>
    %43 = arith.mulf %42, %32 : vector<16x256xf32>
    %cst_19 = arith.constant 0.254829586 : f32
    %44 = vector.broadcast %cst_19 : f32 to vector<16x256xf32>
    %45 = arith.addf %43, %44 : vector<16x256xf32>
    %46 = arith.mulf %45, %32 : vector<16x256xf32>
    %cst_20 = arith.constant 0.000000e+00 : f32
    %47 = vector.broadcast %cst_20 : f32 to vector<16x256xf32>
    %48 = arith.subf %47, %27 : vector<16x256xf32>
    %49 = arith.mulf %48, %27 : vector<16x256xf32>
    %50 = math.exp %49 : vector<16x256xf32>
    %51 = arith.mulf %46, %50 : vector<16x256xf32>
    %cst_21 = arith.constant 1.000000e+00 : f32
    %52 = vector.broadcast %cst_21 : f32 to vector<16x256xf32>
    %53 = arith.subf %52, %51 : vector<16x256xf32>
    %cst_22 = arith.constant 0.000000e+00 : f32
    %54 = vector.broadcast %cst_22 : f32 to vector<16x256xf32>
    %55 = arith.cmpf oge, %26, %54 : vector<16x256xf32>
    %cst_23 = arith.constant 0.000000e+00 : f32
    %56 = vector.broadcast %cst_23 : f32 to vector<16x256xf32>
    %57 = arith.subf %56, %53 : vector<16x256xf32>
    %58 = arith.select %55, %53, %57 : vector<16x256xi1>, vector<16x256xf32>
    %cst_24 = arith.constant 1.000000e+00 : f32
    %59 = vector.broadcast %cst_24 : f32 to vector<16x256xf32>
    %60 = arith.addf %59, %58 : vector<16x256xf32>
    %61 = arith.mulf %24, %60 : vector<16x256xf32>
    %c0_25 = arith.constant 0 : index
    %c0_26 = arith.constant 0 : index
    %62 = vector.load %arg5[%c0_25, %c0_26] : memref<16x1xf32, #tpu.memory_space<vmem>>, vector<16x1xf32>
    %c4 = arith.constant 4 : index
    %c0_27 = arith.constant 0 : index
    %c0_28 = arith.constant 0 : index
    %63 = vector.load %arg4[%c4, %c0_27, %c0_28] : memref<9x16x256xf32, #tpu.memory_space<vmem>>, vector<1x16x256xf32>
    %64 = vector.shape_cast %63 : vector<1x16x256xf32> to vector<16x256xf32>
    %65 = arith.mulf %64, %61 : vector<16x256xf32>
    %66 = vector.broadcast %62 : vector<16x1xf32> to vector<16x256xf32>
    %67 = arith.addf %66, %65 : vector<16x256xf32>
    %c17_i32 = arith.constant 17 : i32
    %68 = tpu.dynamic_rotate %61 by %c17_i32 dim 1 : vector<16x256xf32>, i32 -> vector<16x256xf32>
    %c0_29 = arith.constant 0 : index
    %c0_30 = arith.constant 0 : index
    %c0_31 = arith.constant 0 : index
    %69 = vector.load %arg4[%c0_29, %c0_30, %c0_31] : memref<9x16x256xf32, #tpu.memory_space<vmem>>, vector<1x16x256xf32>
    %70 = vector.shape_cast %69 : vector<1x16x256xf32> to vector<16x256xf32>
    %71 = arith.mulf %70, %68 : vector<16x256xf32>
    %72 = arith.addf %67, %71 : vector<16x256xf32>
    %c16_i32 = arith.constant 16 : i32
    %73 = tpu.dynamic_rotate %61 by %c16_i32 dim 1 : vector<16x256xf32>, i32 -> vector<16x256xf32>
    %c1 = arith.constant 1 : index
    %c0_32 = arith.constant 0 : index
    %c0_33 = arith.constant 0 : index
    %74 = vector.load %arg4[%c1, %c0_32, %c0_33] : memref<9x16x256xf32, #tpu.memory_space<vmem>>, vector<1x16x256xf32>
    %75 = vector.shape_cast %74 : vector<1x16x256xf32> to vector<16x256xf32>
    %76 = arith.mulf %75, %73 : vector<16x256xf32>
    %77 = arith.addf %72, %76 : vector<16x256xf32>
    %c15_i32 = arith.constant 15 : i32
    %78 = tpu.dynamic_rotate %61 by %c15_i32 dim 1 : vector<16x256xf32>, i32 -> vector<16x256xf32>
    %c2 = arith.constant 2 : index
    %c0_34 = arith.constant 0 : index
    %c0_35 = arith.constant 0 : index
    %79 = vector.load %arg4[%c2, %c0_34, %c0_35] : memref<9x16x256xf32, #tpu.memory_space<vmem>>, vector<1x16x256xf32>
    %80 = vector.shape_cast %79 : vector<1x16x256xf32> to vector<16x256xf32>
    %81 = arith.mulf %80, %78 : vector<16x256xf32>
    %82 = arith.addf %77, %81 : vector<16x256xf32>
    %c1_i32 = arith.constant 1 : i32
    %83 = tpu.dynamic_rotate %61 by %c1_i32 dim 1 : vector<16x256xf32>, i32 -> vector<16x256xf32>
    %c3 = arith.constant 3 : index
    %c0_36 = arith.constant 0 : index
    %c0_37 = arith.constant 0 : index
    %84 = vector.load %arg4[%c3, %c0_36, %c0_37] : memref<9x16x256xf32, #tpu.memory_space<vmem>>, vector<1x16x256xf32>
    %85 = vector.shape_cast %84 : vector<1x16x256xf32> to vector<16x256xf32>
    %86 = arith.mulf %85, %83 : vector<16x256xf32>
    %87 = arith.addf %82, %86 : vector<16x256xf32>
    %c255_i32 = arith.constant 255 : i32
    %88 = tpu.dynamic_rotate %61 by %c255_i32 dim 1 : vector<16x256xf32>, i32 -> vector<16x256xf32>
    %c5 = arith.constant 5 : index
    %c0_38 = arith.constant 0 : index
    %c0_39 = arith.constant 0 : index
    %89 = vector.load %arg4[%c5, %c0_38, %c0_39] : memref<9x16x256xf32, #tpu.memory_space<vmem>>, vector<1x16x256xf32>
    %90 = vector.shape_cast %89 : vector<1x16x256xf32> to vector<16x256xf32>
    %91 = arith.mulf %90, %88 : vector<16x256xf32>
    %92 = arith.addf %87, %91 : vector<16x256xf32>
    %c241_i32 = arith.constant 241 : i32
    %93 = tpu.dynamic_rotate %61 by %c241_i32 dim 1 : vector<16x256xf32>, i32 -> vector<16x256xf32>
    %c6 = arith.constant 6 : index
    %c0_40 = arith.constant 0 : index
    %c0_41 = arith.constant 0 : index
    %94 = vector.load %arg4[%c6, %c0_40, %c0_41] : memref<9x16x256xf32, #tpu.memory_space<vmem>>, vector<1x16x256xf32>
    %95 = vector.shape_cast %94 : vector<1x16x256xf32> to vector<16x256xf32>
    %96 = arith.mulf %95, %93 : vector<16x256xf32>
    %97 = arith.addf %92, %96 : vector<16x256xf32>
    %c240_i32 = arith.constant 240 : i32
    %98 = tpu.dynamic_rotate %61 by %c240_i32 dim 1 : vector<16x256xf32>, i32 -> vector<16x256xf32>
    %c7 = arith.constant 7 : index
    %c0_42 = arith.constant 0 : index
    %c0_43 = arith.constant 0 : index
    %99 = vector.load %arg4[%c7, %c0_42, %c0_43] : memref<9x16x256xf32, #tpu.memory_space<vmem>>, vector<1x16x256xf32>
    %100 = vector.shape_cast %99 : vector<1x16x256xf32> to vector<16x256xf32>
    %101 = arith.mulf %100, %98 : vector<16x256xf32>
    %102 = arith.addf %97, %101 : vector<16x256xf32>
    %c239_i32 = arith.constant 239 : i32
    %103 = tpu.dynamic_rotate %61 by %c239_i32 dim 1 : vector<16x256xf32>, i32 -> vector<16x256xf32>
    %c8 = arith.constant 8 : index
    %c0_44 = arith.constant 0 : index
    %c0_45 = arith.constant 0 : index
    %104 = vector.load %arg4[%c8, %c0_44, %c0_45] : memref<9x16x256xf32, #tpu.memory_space<vmem>>, vector<1x16x256xf32>
    %105 = vector.shape_cast %104 : vector<1x16x256xf32> to vector<16x256xf32>
    %106 = arith.mulf %105, %103 : vector<16x256xf32>
    %107 = arith.addf %102, %106 : vector<16x256xf32>
    %cst_46 = arith.constant 5.000000e-01 : f32
    %108 = vector.broadcast %cst_46 : f32 to vector<16x256xf32>
    %109 = arith.mulf %108, %107 : vector<16x256xf32>
    %cst_47 = arith.constant 0.707106769 : f32
    %110 = vector.broadcast %cst_47 : f32 to vector<16x256xf32>
    %111 = arith.mulf %107, %110 : vector<16x256xf32>
    %112 = math.absf %111 : vector<16x256xf32>
    %cst_48 = arith.constant 0.327591091 : f32
    %113 = vector.broadcast %cst_48 : f32 to vector<16x256xf32>
    %114 = arith.mulf %113, %112 : vector<16x256xf32>
    %cst_49 = arith.constant 1.000000e+00 : f32
    %115 = vector.broadcast %cst_49 : f32 to vector<16x256xf32>
    %116 = arith.addf %115, %114 : vector<16x256xf32>
    %117 = tpu.reciprocal %116 {approx = true} : vector<16x256xf32> -> vector<16x256xf32>
    %cst_50 = arith.constant 1.06140542 : f32
    %118 = vector.broadcast %cst_50 : f32 to vector<16x256xf32>
    %119 = arith.mulf %118, %117 : vector<16x256xf32>
    %cst_51 = arith.constant -1.45315206 : f32
    %120 = vector.broadcast %cst_51 : f32 to vector<16x256xf32>
    %121 = arith.addf %119, %120 : vector<16x256xf32>
    %122 = arith.mulf %121, %117 : vector<16x256xf32>
    %cst_52 = arith.constant 1.42141378 : f32
    %123 = vector.broadcast %cst_52 : f32 to vector<16x256xf32>
    %124 = arith.addf %122, %123 : vector<16x256xf32>
    %125 = arith.mulf %124, %117 : vector<16x256xf32>
    %cst_53 = arith.constant -0.284496725 : f32
    %126 = vector.broadcast %cst_53 : f32 to vector<16x256xf32>
    %127 = arith.addf %125, %126 : vector<16x256xf32>
    %128 = arith.mulf %127, %117 : vector<16x256xf32>
    %cst_54 = arith.constant 0.254829586 : f32
    %129 = vector.broadcast %cst_54 : f32 to vector<16x256xf32>
    %130 = arith.addf %128, %129 : vector<16x256xf32>
    %131 = arith.mulf %130, %117 : vector<16x256xf32>
    %cst_55 = arith.constant 0.000000e+00 : f32
    %132 = vector.broadcast %cst_55 : f32 to vector<16x256xf32>
    %133 = arith.subf %132, %112 : vector<16x256xf32>
    %134 = arith.mulf %133, %112 : vector<16x256xf32>
    %135 = math.exp %134 : vector<16x256xf32>
    %136 = arith.mulf %131, %135 : vector<16x256xf32>
    %cst_56 = arith.constant 1.000000e+00 : f32
    %137 = vector.broadcast %cst_56 : f32 to vector<16x256xf32>
    %138 = arith.subf %137, %136 : vector<16x256xf32>
    %cst_57 = arith.constant 0.000000e+00 : f32
    %139 = vector.broadcast %cst_57 : f32 to vector<16x256xf32>
    %140 = arith.cmpf oge, %111, %139 : vector<16x256xf32>
    %cst_58 = arith.constant 0.000000e+00 : f32
    %141 = vector.broadcast %cst_58 : f32 to vector<16x256xf32>
    %142 = arith.subf %141, %138 : vector<16x256xf32>
    %143 = arith.select %140, %138, %142 : vector<16x256xi1>, vector<16x256xf32>
    %cst_59 = arith.constant 1.000000e+00 : f32
    %144 = vector.broadcast %cst_59 : f32 to vector<16x256xf32>
    %145 = arith.addf %144, %143 : vector<16x256xf32>
    %146 = arith.mulf %109, %145 : vector<16x256xf32>
    %147 = arith.addf %61, %146 : vector<16x256xf32>
    %c0_60 = arith.constant 0 : index
    %c0_61 = arith.constant 0 : index
    %148 = vector.load %arg6[%c0_60, %c0_61] : memref<4x16xf32, #tpu.memory_space<vmem>>, vector<4x16xf32>
    %cst_62 = arith.constant dense<0.000000e+00> : vector<4x256xf32>
    %149 = tpu.matmul %148, %147, %cst_62 {dimension_numbers = #tpu.dot_dimension_numbers<[1], [0], [0], [1], [0, 0, 1, 1], [], []>} : vector<4x16xf32>, vector<16x256xf32>, vector<4x256xf32> -> vector<4x256xf32>
    %c0_63 = arith.constant 0 : index
    %c0_64 = arith.constant 0 : index
    %150 = vector.load %arg7[%c0_63, %c0_64] : memref<4x1xf32, #tpu.memory_space<vmem>>, vector<4x1xf32>
    %151 = vector.broadcast %150 : vector<4x1xf32> to vector<4x256xf32>
    %152 = arith.addf %149, %151 : vector<4x256xf32>
    %c0_65 = arith.constant 0 : index
    %c0_66 = arith.constant 0 : index
    %c0_67 = arith.constant 0 : index
    %153 = vector.load %arg8[%c0_65, %c0_66, %c0_67] : memref<1x4x256xf32, #tpu.memory_space<vmem>>, vector<1x4x256xf32>
    %154 = vector.shape_cast %153 : vector<1x4x256xf32> to vector<4x256xf32>
    %155 = vector.shape_cast %152 : vector<4x256xf32> to vector<1x4x256xf32>
    tpu.vector_store %arg8[%c0_65, %c0_66, %c0_67], %155 {strides = array<i32>} : memref<1x4x256xf32, #tpu.memory_space<vmem>>, vector<1x4x256xf32>,
    return
  }
  func.func @transform_0(%arg0: i32) -> (i32, i32, i32) {
    %c0_i32 = arith.constant 0 : i32
    %c0_i32_0 = arith.constant 0 : i32
    %c0_i32_1 = arith.constant 0 : i32
    return %arg0, %c0_i32, %c0_i32_0 : i32, i32, i32
  }
  func.func @transform_1(%arg0: i32) -> (i32, i32) {
    %c0_i32 = arith.constant 0 : i32
    %c0_i32_0 = arith.constant 0 : i32
    %c0_i32_1 = arith.constant 0 : i32
    return %c0_i32, %c0_i32_0 : i32, i32
  }
  func.func @transform_2(%arg0: i32) -> (i32, i32) {
    %c0_i32 = arith.constant 0 : i32
    %c0_i32_0 = arith.constant 0 : i32
    %c0_i32_1 = arith.constant 0 : i32
    return %c0_i32, %c0_i32_0 : i32, i32
  }
  func.func @transform_3(%arg0: i32) -> (i32, i32, i32) {
    %c0_i32 = arith.constant 0 : i32
    %c0_i32_0 = arith.constant 0 : i32
    %c0_i32_1 = arith.constant 0 : i32
    %c0_i32_2 = arith.constant 0 : i32
    return %c0_i32, %c0_i32_0, %c0_i32_1 : i32, i32, i32
  }
  func.func @transform_4(%arg0: i32) -> (i32, i32) {
    %c0_i32 = arith.constant 0 : i32
    %c0_i32_0 = arith.constant 0 : i32
    %c0_i32_1 = arith.constant 0 : i32
    return %c0_i32, %c0_i32_0 : i32, i32
  }
  func.func @transform_5(%arg0: i32) -> (i32, i32) {
    %c0_i32 = arith.constant 0 : i32
    %c0_i32_0 = arith.constant 0 : i32
    %c0_i32_1 = arith.constant 0 : i32
    return %c0_i32, %c0_i32_0 : i32, i32
  }
  func.func @transform_6(%arg0: i32) -> (i32, i32) {
    %c0_i32 = arith.constant 0 : i32
    %c0_i32_0 = arith.constant 0 : i32
    %c0_i32_1 = arith.constant 0 : i32
    return %c0_i32, %c0_i32_0 : i32, i32
  }
  func.func @transform_7(%arg0: i32) -> (i32, i32, i32) {
    %c0_i32 = arith.constant 0 : i32
    %c0_i32_0 = arith.constant 0 : i32
    %c0_i32_1 = arith.constant 0 : i32
    return %arg0, %c0_i32, %c0_i32_0 : i32, i32, i32
  }
}

</mosaic_0001>

<llo_original>
// kernel: tpu_custom_call.1
$region0: #{tpu_custom_call.1}
  #allocation0 [shape = 'u32[]', space=smem, size = 0x4, offset = 0x4, fixed_abs, tag = 'smem constant byte address 0x4 - core index']
  #allocation1 [shape = 'u32[72,128]{1,0:T(1,128)}', space=vmem, size = 0x9000, scoped, tag = 'internal scratch']
  %s0 = inlined_call_operand.vmem [shape: f32[2,4,256], index: 0, kind: input, shape index: {}]
  %s1 = inlined_call_operand.vmem [shape: f32[16,4], index: 1, kind: input, shape index: {}]
  %s2 = inlined_call_operand.vmem [shape: f32[16,1], index: 2, kind: input, shape index: {}]
  %s3 = inlined_call_operand.hbm [shape: f32[9,16,256], index: 3, kind: input, shape index: {}]
  %s4 = inlined_call_operand.vmem [shape: f32[16,1], index: 4, kind: input, shape index: {}]
  %s5 = inlined_call_operand.vmem [shape: f32[4,16], index: 5, kind: input, shape index: {}]
  %s6 = inlined_call_operand.vmem [shape: f32[4,1], index: 6, kind: input, shape index: {}]
  %s7 = inlined_call_operand.hbm [shape: f32[2,4,256], index: 7, kind: output, shape index: {}]
  %s8 = sld [smem:[#allocation0]]
  $region65: #{tpu_custom_call.1} parent=0
    _
  %s10 = ssub.s32 1, %s8
  %s11 = scalar_select 0, %s10, %s8
  $region1: #{tpu_custom_call.1} parent=0
    #allocation2 [shape = 'u8[147456]{0}', space=vmem, size = 0x24000, scoped, tag = 'input window, operand 3, single buffered']
    #allocation3 [shape = 's32[2]{0}', space=sflag, size = 0x8, scoped, tag = 'scoped memory for tpu_custom_call.1']
    #allocation4 [shape = 's32[2]{0}', space=sflag, size = 0x8, scoped, tag = 'scoped memory for tpu_custom_call.1']
    #allocation5 [shape = 'u8[8192]{0}', space=vmem, size = 0x2000, scoped, tag = 'output window, operand 0']
    %12 = vsyncpa [#allocation3], 0
    %13 = vsyncpa [#allocation4], 0
    %s14 = scalar_lea.sflag [#allocation4], 1
    %15 = vsyncpa %s14, 0
    loop: start=0, step=1, limit=4
    $region2: #{tpu_custom_call.1} parent=1 // loop_pre_header
      _
    $region3: #{tpu_custom_call.1} parent=1 // loop_header
      %s17 = sphi 0, %s21
      %p18 = scmp.ge.s32.totalorder %s17, 4
      %s27 = sphi 0, %s29
      %s30 = sphi 0, %s27
      %s31 = sphi 0, %s30
      %s47 = sphi 0, %s31
      %s51 = sphi 0, %s51
      %s53 = sphi 0, %s51
      %s54 = sphi 0, %s53
      %s68 = sphi 0, %s54
      %s72 = sphi 0, %s72
      %s74 = sphi 0, %s72
      %s75 = sphi 0, %s74
      %s89 = sphi 0, %s75
      %s93 = sphi 0, %s93
      %s95 = sphi 0, %s93
      %s96 = sphi 0, %s95
      %s110 = sphi 0, %s96
      %s114 = sphi 0, %s114
      %s116 = sphi 0, %s114
      %s117 = sphi 0, %s116
      %s131 = sphi 0, %s117
      %s135 = sphi 0, %s135
      %s137 = sphi 0, %s135
      %s138 = sphi 0, %s137
      %s152 = sphi 0, %s138
      %s156 = sphi 0, %s156
      %s158 = sphi 0, %s156
      %s159 = sphi 0, %s158
      %s173 = sphi 0, %s159
      %s179 = sphi 0, %s181
      %s182 = sphi 0, %s179
      %s183 = sphi 0, %s182
      %s199 = sphi 0, %s183
    $region4: #{tpu_custom_call.1} parent=1 // loop_header_branch
      %20 = sbr.rel (%p18) target = $region8
    $region5: #{tpu_custom_call.1} parent=1 // loop_body
      %s22 = ssub.s32 %s17, 1
      %s23 = ssub.s32 %s17, 2
      %s24 = sadd.s32 %s17, 1
      %s25 = ssub.s32 %s17, %s24
      %p26 = scmp.eq.s32.totalorder %s25, 0
      %s28 = sadd.s32 %s27, 1
      %s29 = scalar_select %p26, %s27, %s28
      %p32 = pneg %p26
      %p33 = scmp.eq.s32.totalorder %s17, 1
      %p34 = por %p32, %p33
      %p35 = scmp.ne.s32.totalorder %s27, %s30
      %p36 = scmp.eq.s32.totalorder %s17, 0
      %p37 = por %p35, %p36
      %p38 = scmp.ne.s32.totalorder %s27, %s30
      %p39 = scmp.eq.s32.totalorder %s22, 1
      %p40 = por %p38, %p39
      %p41 = scmp.ne.s32.totalorder %s30, %s31
      %p42 = scmp.eq.s32.totalorder %s22, 0
      %p43 = por %p41, %p42
      %p44 = scmp.ne.s32.totalorder %s30, %s31
      %p45 = scmp.eq.s32.totalorder %s23, 1
      %p46 = por %p44, %p45
      %p48 = scmp.ne.s32.totalorder %s31, %s47
      %p49 = scmp.eq.s32.totalorder %s23, 0
      %p50 = por %p48, %p49
      %s52 = sadd.s32 %s51, 1
      %p55 = scmp.eq.s32.totalorder %s17, 1
      %p56 = scmp.ne.s32.totalorder %s51, %s53
      %p57 = scmp.eq.s32.totalorder %s17, 0
      %p58 = por %p56, %p57
      %p59 = scmp.ne.s32.totalorder %s51, %s53
      %p60 = scmp.eq.s32.totalorder %s22, 1
      %p61 = por %p59, %p60
      %p62 = scmp.ne.s32.totalorder %s53, %s54
      %p63 = scmp.eq.s32.totalorder %s22, 0
      %p64 = por %p62, %p63
      %p65 = scmp.ne.s32.totalorder %s53, %s54
      %p66 = scmp.eq.s32.totalorder %s23, 1
      %p67 = por %p65, %p66
      %p69 = scmp.ne.s32.totalorder %s54, %s68
      %p70 = scmp.eq.s32.totalorder %s23, 0
      %p71 = por %p69, %p70
      %s73 = sadd.s32 %s72, 1
      %p76 = scmp.eq.s32.totalorder %s17, 1
      %p77 = scmp.ne.s32.totalorder %s72, %s74
      %p78 = scmp.eq.s32.totalorder %s17, 0
      %p79 = por %p77, %p78
      %p80 = scmp.ne.s32.totalorder %s72, %s74
      %p81 = scmp.eq.s32.totalorder %s22, 1
      %p82 = por %p80, %p81
      %p83 = scmp.ne.s32.totalorder %s74, %s75
      %p84 = scmp.eq.s32.totalorder %s22, 0
      %p85 = por %p83, %p84
      %p86 = scmp.ne.s32.totalorder %s74, %s75
      %p87 = scmp.eq.s32.totalorder %s23, 1
      %p88 = por %p86, %p87
      %p90 = scmp.ne.s32.totalorder %s75, %s89
      %p91 = scmp.eq.s32.totalorder %s23, 0
      %p92 = por %p90, %p91
      %s94 = sadd.s32 %s93, 1
      %p97 = scmp.eq.s32.totalorder %s17, 1
      %p98 = scmp.ne.s32.totalorder %s93, %s95
      %p99 = scmp.eq.s32.totalorder %s17, 0
      %p100 = por %p98, %p99
      %p101 = scmp.ne.s32.totalorder %s93, %s95
      %p102 = scmp.eq.s32.totalorder %s22, 1
      %p103 = por %p101, %p102
      %p104 = scmp.ne.s32.totalorder %s95, %s96
      %p105 = scmp.eq.s32.totalorder %s22, 0
      %p106 = por %p104, %p105
      %p107 = scmp.ne.s32.totalorder %s95, %s96
      %p108 = scmp.eq.s32.totalorder %s23, 1
      %p109 = por %p107, %p108
      %p111 = scmp.ne.s32.totalorder %s96, %s110
      %p112 = scmp.eq.s32.totalorder %s23, 0
      %p113 = por %p111, %p112
      %s115 = sadd.s32 %s114, 1
      %p118 = scmp.eq.s32.totalorder %s17, 1
      %p119 = scmp.ne.s32.totalorder %s114, %s116
      %p120 = scmp.eq.s32.totalorder %s17, 0
      %p121 = por %p119, %p120
      %p122 = scmp.ne.s32.totalorder %s114, %s116
      %p123 = scmp.eq.s32.totalorder %s22, 1
      %p124 = por %p122, %p123
      %p125 = scmp.ne.s32.totalorder %s116, %s117
      %p126 = scmp.eq.s32.totalorder %s22, 0
      %p127 = por %p125, %p126
      %p128 = scmp.ne.s32.totalorder %s116, %s117
      %p129 = scmp.eq.s32.totalorder %s23, 1
      %p130 = por %p128, %p129
      %p132 = scmp.ne.s32.totalorder %s117, %s131
      %p133 = scmp.eq.s32.totalorder %s23, 0
      %p134 = por %p132, %p133
      %s136 = sadd.s32 %s135, 1
      %p139 = scmp.eq.s32.totalorder %s17, 1
      %p140 = scmp.ne.s32.totalorder %s135, %s137
      %p141 = scmp.eq.s32.totalorder %s17, 0
      %p142 = por %p140, %p141
      %p143 = scmp.ne.s32.totalorder %s135, %s137
      %p144 = scmp.eq.s32.totalorder %s22, 1
      %p145 = por %p143, %p144
      %p146 = scmp.ne.s32.totalorder %s137, %s138
      %p147 = scmp.eq.s32.totalorder %s22, 0
      %p148 = por %p146, %p147
      %p149 = scmp.ne.s32.totalorder %s137, %s138
      %p150 = scmp.eq.s32.totalorder %s23, 1
      %p151 = por %p149, %p150
      %p153 = scmp.ne.s32.totalorder %s138, %s152
      %p154 = scmp.eq.s32.totalorder %s23, 0
      %p155 = por %p153, %p154
      %s157 = sadd.s32 %s156, 1
      %p160 = scmp.eq.s32.totalorder %s17, 1
      %p161 = scmp.ne.s32.totalorder %s156, %s158
      %p162 = scmp.eq.s32.totalorder %s17, 0
      %p163 = por %p161, %p162
      %p164 = scmp.ne.s32.totalorder %s156, %s158
      %p165 = scmp.eq.s32.totalorder %s22, 1
      %p166 = por %p164, %p165
      %p167 = scmp.ne.s32.totalorder %s158, %s159
      %p168 = scmp.eq.s32.totalorder %s22, 0
      %p169 = por %p167, %p168
      %p170 = scmp.ne.s32.totalorder %s158, %s159
      %p171 = scmp.eq.s32.totalorder %s23, 1
      %p172 = por %p170, %p171
      %p174 = scmp.ne.s32.totalorder %s159, %s173
      %p175 = scmp.eq.s32.totalorder %s23, 0
      %p176 = por %p174, %p175
      %s177 = ssub.s32 %s17, %s24
      %p178 = scmp.eq.s32.totalorder %s177, 0
      %s180 = sadd.s32 %s179, 1
      %s181 = scalar_select %p178, %s179, %s180
      %p184 = pneg %p178
      %p185 = scmp.eq.s32.totalorder %s17, 1
      %p186 = por %p184, %p185
      %p187 = scmp.ne.s32.totalorder %s179, %s182
      %p188 = scmp.eq.s32.totalorder %s17, 0
      %p189 = por %p187, %p188
      %p190 = scmp.ne.s32.totalorder %s179, %s182
      %p191 = scmp.eq.s32.totalorder %s22, 1
      %p192 = por %p190, %p191
      %p193 = scmp.ne.s32.totalorder %s182, %s183
      %p194 = scmp.eq.s32.totalorder %s22, 0
      %p195 = por %p193, %p194
      %p196 = scmp.ne.s32.totalorder %s182, %s183
      %p197 = scmp.eq.s32.totalorder %s23, 1
      %p198 = por %p196, %p197
      %p200 = scmp.ne.s32.totalorder %s183, %s199
      %p201 = scmp.eq.s32.totalorder %s23, 0
      %p202 = por %p200, %p201
      %p203 = scmp.le.s32.totalorder 1, %s17
      %p204 = scmp.lt.s32.totalorder %s17, 3
      %p205 = pnand %p203, %p204
      %p206 = pneg %p205
      // Predicated region
      $region9: #{tpu_custom_call.1} parent=5 // pred_check
        _
      $region10: #{tpu_custom_call.1} parent=5 // pred_check_branch
        %208 = sbr.rel (%p205) target = $region12
      $region11: #{tpu_custom_call.1} parent=5 // pred_region
        %s209 = ssub.s32 %s17, 1
        // Predicated region
        $region13: #{tpu_custom_call.1} parent=11 // pred_check
          %p210 = pneg %p64
        $region14: #{tpu_custom_call.1} parent=11 // pred_check_branch
          %212 = sbr.rel (%p210) target = $region16
        $region15: #{tpu_custom_call.1} parent=11 // pred_region
          _
        $region16: #{tpu_custom_call.1} parent=11 // pred_fallthru
          _
        // Predicated region
        $region17: #{tpu_custom_call.1} parent=11 // pred_check
          %p213 = pneg %p85
        $region18: #{tpu_custom_call.1} parent=11 // pred_check_branch
          %215 = sbr.rel (%p213) target = $region20
        $region19: #{tpu_custom_call.1} parent=11 // pred_region
          _
        $region20: #{tpu_custom_call.1} parent=11 // pred_fallthru
          _
        // Predicated region
        $region21: #{tpu_custom_call.1} parent=11 // pred_check
          %p216 = pneg %p106
        $region22: #{tpu_custom_call.1} parent=11 // pred_check_branch
          %218 = sbr.rel (%p216) target = $region24
        $region23: #{tpu_custom_call.1} parent=11 // pred_region
          %220 = vsyncadd [#allocation3], 0
          %s221 = sshll.u32 %s3, 4
          %s222 = int_to_ptr.hbm [resolvable:$true] %s221
          %s223 = sshll.u32 [#allocation2], 4
          %s224 = int_to_ptr.vmem [resolvable:$true] %s223
          %229 = dma.hbm_to_vmem [thread:$0]  %s222, 4608, %s224, [#allocation3], 256, 256, 16
        $region24: #{tpu_custom_call.1} parent=11 // pred_fallthru
          _
        // Predicated region
        $region25: #{tpu_custom_call.1} parent=11 // pred_check
          %p230 = pneg %p127
        $region26: #{tpu_custom_call.1} parent=11 // pred_check_branch
          %232 = sbr.rel (%p230) target = $region28
        $region27: #{tpu_custom_call.1} parent=11 // pred_region
          _
        $region28: #{tpu_custom_call.1} parent=11 // pred_fallthru
          _
        // Predicated region
        $region29: #{tpu_custom_call.1} parent=11 // pred_check
          %p233 = pneg %p148
        $region30: #{tpu_custom_call.1} parent=11 // pred_check_branch
          %235 = sbr.rel (%p233) target = $region32
        $region31: #{tpu_custom_call.1} parent=11 // pred_region
          _
        $region32: #{tpu_custom_call.1} parent=11 // pred_fallthru
          _
        // Predicated region
        $region33: #{tpu_custom_call.1} parent=11 // pred_check
          %p236 = pneg %p169
        $region34: #{tpu_custom_call.1} parent=11 // pred_check_branch
          %238 = sbr.rel (%p236) target = $region36
        $region35: #{tpu_custom_call.1} parent=11 // pred_region
          _
        $region36: #{tpu_custom_call.1} parent=11 // pred_fallthru
          _
      $region12: #{tpu_custom_call.1} parent=5 // pred_fallthru
        _
      %p239 = scmp.lt.s32.totalorder %s17, 2
      // Predicated region
      $region37: #{tpu_custom_call.1} parent=5 // pred_check
        %p240 = pneg %p239
      $region38: #{tpu_custom_call.1} parent=5 // pred_check_branch
        %242 = sbr.rel (%p240) target = $region40
      $region39: #{tpu_custom_call.1} parent=5 // pred_region
        // Predicated region
        $region41: #{tpu_custom_call.1} parent=39 // pred_check
          %p243 = pneg %p37
        $region42: #{tpu_custom_call.1} parent=39 // pred_check_branch
          %245 = sbr.rel (%p243) target = $region44
        $region43: #{tpu_custom_call.1} parent=39 // pred_region
          %p246 = scmp.lt.s32.totalorder %s17, 1
          %s247 = scalar_select %p246, %s17, 1
          %s248 = smul.addr %s247, 2
          %s249 = smul.addr %s248, 4
          %s250 = scalar_lea.vmem %s0, %s249
        $region44: #{tpu_custom_call.1} parent=39 // pred_fallthru
          _
      $region40: #{tpu_custom_call.1} parent=5 // pred_fallthru
        _
      %p251 = scmp.le.s32.totalorder 1, %s17
      %p252 = scmp.lt.s32.totalorder %s17, 3
      %p253 = pnand %p251, %p252
      %p254 = pneg %p253
      // Predicated region
      $region45: #{tpu_custom_call.1} parent=5 // pred_check
        _
      $region46: #{tpu_custom_call.1} parent=5 // pred_check_branch
        %256 = sbr.rel (%p253) target = $region48
      $region47: #{tpu_custom_call.1} parent=5 // pred_region
        %s257 = ssub.s32 %s17, 1
        // Predicated region
        $region49: #{tpu_custom_call.1} parent=47 // pred_check
          %p258 = pneg %p106
        $region50: #{tpu_custom_call.1} parent=47 // pred_check_branch
          %260 = sbr.rel (%p258) target = $region52
        $region51: #{tpu_custom_call.1} parent=47 // pred_region
          %262 = dma.done [#allocation3], 4608
        $region52: #{tpu_custom_call.1} parent=47 // pred_fallthru
          _
        %p263 = scmp.lt.s32.totalorder %s22, 1
        %s264 = scalar_select %p263, %s22, 1
        %s265 = smul.addr %s264, 2
        %s266 = smul.addr %s265, 4
        %s267 = scalar_lea.vmem %s0, %s266
        %p268 = pneg %p43
        %p269 = pneg %p40
        %p270 = pneg %p64
        %p271 = pneg %p61
        %p272 = pneg %p85
        %p273 = pneg %p82
        %p274 = pneg %p106
        %p275 = pneg %p103
        %p276 = pneg %p127
        %p277 = pneg %p124
        %p278 = pneg %p148
        %p279 = pneg %p145
        %p280 = pneg %p169
        %p281 = pneg %p166
        %p282 = pneg %p195
        %p283 = pneg %p192
        %s284 = sand.u32 %s182, 1
        %s285 = scalar_lea.sflag [#allocation4], %s284
        %s286 = sand.u32 %s182, 1
        %s287 = smul.addr %s286, 8
        %s288 = scalar_lea.vmem [#allocation5], %s287
        %p289 = scmp.lt.s32.totalorder %s22, 1
        %s290 = scalar_select %p289, %s22, 1
        %s291 = smul.addr %s290, 2
        %s292 = smul.addr %s291, 4
        %s293 = scalar_lea.vmem %s0, %s292
        %v294 = vld [vmem:[%s293] sm:$0xff]
        %296 = vst [vmem:[#allocation1] ss:$2 sm:$0xff] %v294
        %v297 = vld.sshfl [vmem:[#allocation1] sm:$0xff pattern:$0x75316420]
        %v298 = vld.sshfl [vmem:[#allocation1 + $0x8] sm:$0xff pattern:$0x75316420]
        %vm301 = vcmask 1043456
        %v302 = vsel %vm301, %v297, 0.0
        %v303 = vrot.slane %v302, 4
        %v304 = vadd.f32 %v302, %v303
        %v305 = vrot.slane %v304, 2
        %v306 = vadd.f32 %v304, %v305
        %v307 = vrot.slane %v306, 1
        %v308 = vadd.f32 %v306, %v307
        %v309 = vsel %vm301, %v298, 0.0
        %v310 = vrot.slane %v309, 4
        %v311 = vadd.f32 %v309, %v310
        %v312 = vrot.slane %v311, 2
        %v313 = vadd.f32 %v311, %v312
        %v314 = vrot.slane %v313, 1
        %v315 = vadd.f32 %v313, %v314
        %v316 = vmul.f32 %v308, 0.25
        %v317 = vmul.f32 %v315, 0.25
        %v320 = vrot.slane %v317, 4
        %v321 = vsel %vm301, %v316, %v320
        %v323 = vsub.f32 %v294, %v321
        %v324 = vmul.f32 %v323, %v323
        %326 = vst [vmem:[#allocation1] ss:$2 sm:$0xff] %v324
        %v327 = vld.sshfl [vmem:[#allocation1] sm:$0xff pattern:$0x75316420]
        %v328 = vld.sshfl [vmem:[#allocation1 + $0x8] sm:$0xff pattern:$0x75316420]
        %v331 = vsel %vm301, %v327, 0.0
        %v332 = vrot.slane %v331, 4
        %v333 = vadd.f32 %v331, %v332
        %v334 = vrot.slane %v333, 2
        %v335 = vadd.f32 %v333, %v334
        %v336 = vrot.slane %v335, 1
        %v337 = vadd.f32 %v335, %v336
        %v338 = vsel %vm301, %v328, 0.0
        %v339 = vrot.slane %v338, 4
        %v340 = vadd.f32 %v338, %v339
        %v341 = vrot.slane %v340, 2
        %v342 = vadd.f32 %v340, %v341
        %v343 = vrot.slane %v342, 1
        %v344 = vadd.f32 %v342, %v343
        %v345 = vmul.f32 %v337, 0.25
        %v346 = vmul.f32 %v344, 0.25
        %v347 = vadd.f32 %v345, 1e-06
        %v348 = vadd.f32 %v346, 1e-06
        %v349 = vrsqrt.pop %v347
        %v350 = vmul.f32 %v349, %v347
        %v351 = vmul.f32 %v350, %v349
        %v352 = vmul.f32 0.5, %v351
        %v353 = vsub.f32 1.5, %v352
        %v354 = vmul.f32 %v349, %v353
        %vm355 = vweird.f32 %v347
        %vm356 = vweird.f32 %v349
        %vm357 = vmor %vm355, %vm356
        %v358 = vsel %vm357, %v349, %v354
        %v359 = vrsqrt.pop %v348
        %v360 = vmul.f32 %v359, %v348
        %v361 = vmul.f32 %v360, %v359
        %v362 = vmul.f32 0.5, %v361
        %v363 = vsub.f32 1.5, %v362
        %v364 = vmul.f32 %v359, %v363
        %vm365 = vweird.f32 %v348
        %vm366 = vweird.f32 %v359
        %vm367 = vmor %vm365, %vm366
        %v368 = vsel %vm367, %v359, %v364
        %v371 = vrot.slane %v368, 4
        %v372 = vsel %vm301, %v358, %v371
        %v374 = vmul.f32 %v323, %v372
        %v375 = vld [vmem:[%s1] sm:$0xff]
        %v376 = vld [vmem:[%s1 + $0x8] sm:$0xff]
        %v377 = vld [vmem:[%s2] sm:$0xff]
        %v378 = vld [vmem:[%s2 + $0x8] sm:$0xff]
        %380 = vset.pattern.permute.xlu0 0
        %381 = vperm.xlu0 %380, %v377
        %v382 = vpop.permute.xlu0 %381
        %385 = vset.pattern.permute.xlu0 0
        %386 = vperm.xlu0 %385, %v378
        %v387 = vpop.permute.xlu0 %386
        %390 = vst [vmem:[#allocation1] ss:$2 sm:$0xff] %v374
        %v391 = vld.sshfl [vmem:[#allocation1] sm:$0xff pattern:$0x75316420]
        %v392 = vld.sshfl [vmem:[#allocation1 + $0x8] sm:$0xff pattern:$0x75316420]
        %vm393 = vcmask 31744
        %v395 = vsel %vm393, %v375, 0
        %v398 = vsel %vm393, %v376, 0
        %v400 = vsel %vm301, %v391, 0
        %v402 = vsel %vm301, %v392, 0
        %404 = vmatpush.msra.mxu0 0.0
        %405 = vmatpush.msra.mxu0 0.0
        %406 = vmatpush.msra.mxu0 0.0
        %407 = vmatpush.msra.mxu0 0.0
        %408 = vmatpush.msra.mxu0 0.0
        %409 = vmatpush.msra.mxu0 0.0
        %410 = vmatpush.msra.mxu0 0.0
        %411 = vmatpush.msra.mxu0 0.0
        %412 = vmatpush.msra.mxu0 0.0
        %413 = vmatpush.msra.mxu0 0.0
        %414 = vmatpush.msra.mxu0 0.0
        %415 = vmatpush.msra.mxu0 0.0
        %416 = vmatpush.msra.mxu0 0.0
        %417 = vmatpush.msra.mxu0 0.0
        %418 = vmatpush.msra.mxu0 0.0
        %419 = vmatpush.msra.mxu0 %v400
        %420 = vmatmul.f32.gmra.mxu0 %v395
        %v421 = vpop.f32.mrf.mxu0
        %v422 = vadd.f32 %v382, %v421
        %423 = vmatmul.f32.gmra.mxu0 %v398
        %v424 = vpop.f32.mrf.mxu0
        %v425 = vadd.f32 %v387, %v424
        %426 = vdwg.mxu0
        %427 = vmatpush.msra.mxu0 0.0
        %428 = vmatpush.msra.mxu0 0.0
        %429 = vmatpush.msra.mxu0 0.0
        %430 = vmatpush.msra.mxu0 0.0
        %431 = vmatpush.msra.mxu0 0.0
        %432 = vmatpush.msra.mxu0 0.0
        %433 = vmatpush.msra.mxu0 0.0
        %434 = vmatpush.msra.mxu0 0.0
        %435 = vmatpush.msra.mxu0 0.0
        %436 = vmatpush.msra.mxu0 0.0
        %437 = vmatpush.msra.mxu0 0.0
        %438 = vmatpush.msra.mxu0 0.0
        %439 = vmatpush.msra.mxu0 0.0
        %440 = vmatpush.msra.mxu0 0.0
        %441 = vmatpush.msra.mxu0 0.0
        %442 = vmatpush.msra.mxu0 %v402
        %443 = vmatmul.f32.gmra.mxu0 %v395
        %v444 = vpop.f32.mrf.mxu0
        %v445 = vadd.f32 %v382, %v444
        %446 = vmatmul.f32.gmra.mxu0 %v398
        %v447 = vpop.f32.mrf.mxu0
        %v448 = vadd.f32 %v387, %v447
        %449 = vdwg.mxu0
        %v450 = vmul.f32 %v422, 0.5
        %v451 = vmul.f32 %v445, 0.5
        %v452 = vmul.f32 %v425, 0.5
        %v453 = vmul.f32 %v448, 0.5
        %v454 = vmul.f32 %v422, 0.70710677
        %v455 = vmul.f32 %v445, 0.70710677
        %v456 = vmul.f32 %v425, 0.70710677
        %v457 = vmul.f32 %v448, 0.70710677
        %v458 = vand.u32 2147483647, %v454
        %v459 = vand.u32 2147483647, %v455
        %v460 = vand.u32 2147483647, %v456
        %v461 = vand.u32 2147483647, %v457
        %v462 = vmul.f32 %v458, 0.3275911
        %v463 = vmul.f32 %v459, 0.3275911
        %v464 = vmul.f32 %v460, 0.3275911
        %v465 = vmul.f32 %v461, 0.3275911
        %v466 = vadd.f32 %v462, 1.0
        %v467 = vadd.f32 %v463, 1.0
        %v468 = vadd.f32 %v464, 1.0
        %v469 = vadd.f32 %v465, 1.0
        %v470 = vrcp.pop %v466
        %v471 = vrcp.pop %v467
        %v472 = vrcp.pop %v468
        %v473 = vrcp.pop %v469
        %v474 = vmul.f32 %v470, 1.0614054
        %v475 = vmul.f32 %v471, 1.0614054
        %v476 = vmul.f32 %v472, 1.0614054
        %v477 = vmul.f32 %v473, 1.0614054
        %v478 = vadd.f32 %v474, -1.4531521
        %v479 = vadd.f32 %v475, -1.4531521
        %v480 = vadd.f32 %v476, -1.4531521
        %v481 = vadd.f32 %v477, -1.4531521
        %v482 = vmul.f32 %v478, %v470
        %v483 = vmul.f32 %v479, %v471
        %v484 = vmul.f32 %v480, %v472
        %v485 = vmul.f32 %v481, %v473
        %v486 = vadd.f32 %v482, 1.4214138
        %v487 = vadd.f32 %v483, 1.4214138
        %v488 = vadd.f32 %v484, 1.4214138
        %v489 = vadd.f32 %v485, 1.4214138
        %v490 = vmul.f32 %v486, %v470
        %v491 = vmul.f32 %v487, %v471
        %v492 = vmul.f32 %v488, %v472
        %v493 = vmul.f32 %v489, %v473
        %v494 = vadd.f32 %v490, -0.28449672
        %v495 = vadd.f32 %v491, -0.28449672
        %v496 = vadd.f32 %v492, -0.28449672
        %v497 = vadd.f32 %v493, -0.28449672
        %v498 = vmul.f32 %v494, %v470
        %v499 = vmul.f32 %v495, %v471
        %v500 = vmul.f32 %v496, %v472
        %v501 = vmul.f32 %v497, %v473
        %v502 = vadd.f32 %v498, 0.2548296
        %v503 = vadd.f32 %v499, 0.2548296
        %v504 = vadd.f32 %v500, 0.2548296
        %v505 = vadd.f32 %v501, 0.2548296
        %v506 = vmul.f32 %v502, %v470
        %v507 = vmul.f32 %v503, %v471
        %v508 = vmul.f32 %v504, %v472
        %v509 = vmul.f32 %v505, %v473
        %v510 = vsub.f32 0.0, %v458
        %v511 = vsub.f32 0.0, %v459
        %v512 = vsub.f32 0.0, %v460
        %v513 = vsub.f32 0.0, %v461
        %v514 = vmul.f32 %v510, %v458
        %v515 = vmul.f32 %v511, %v459
        %v516 = vmul.f32 %v512, %v460
        %v517 = vmul.f32 %v513, %v461
        %v518 = vmul.f32 %v514, 1.442695
        %v519 = vpow.pop %v518
        %v520 = vmul.f32 %v515, 1.442695
        %v521 = vpow.pop %v520
        %v522 = vmul.f32 %v516, 1.442695
        %v523 = vpow.pop %v522
        %v524 = vmul.f32 %v517, 1.442695
        %v525 = vpow.pop %v524
        %v526 = vmul.f32 %v506, %v519
        %v527 = vmul.f32 %v507, %v521
        %v528 = vmul.f32 %v508, %v523
        %v529 = vmul.f32 %v509, %v525
        %v530 = vsub.f32 1.0, %v526
        %v531 = vsub.f32 1.0, %v527
        %v532 = vsub.f32 1.0, %v528
        %v533 = vsub.f32 1.0, %v529
        %vm534 = vcmp.ge.f32.partialorder %v454, 0.0
        %vm535 = vcmp.ge.f32.partialorder %v455, 0.0
        %vm536 = vcmp.ge.f32.partialorder %v456, 0.0
        %vm537 = vcmp.ge.f32.partialorder %v457, 0.0
        %v538 = vsub.f32 0.0, %v530
        %v539 = vsub.f32 0.0, %v531
        %v540 = vsub.f32 0.0, %v532
        %v541 = vsub.f32 0.0, %v533
        %v542 = vsel %vm534, %v530, %v538
        %v543 = vsel %vm535, %v531, %v539
        %v544 = vsel %vm536, %v532, %v540
        %v545 = vsel %vm537, %v533, %v541
        %v546 = vadd.f32 %v542, 1.0
        %v547 = vadd.f32 %v543, 1.0
        %v548 = vadd.f32 %v544, 1.0
        %v549 = vadd.f32 %v545, 1.0
        %v550 = vmul.f32 %v450, %v546
        %v551 = vmul.f32 %v451, %v547
        %v552 = vmul.f32 %v452, %v548
        %v553 = vmul.f32 %v453, %v549
        %v554 = vld [vmem:[%s4] sm:$0xff]
        %v555 = vld [vmem:[%s4 + $0x8] sm:$0xff]
        %s556 = scalar_lea.vmem [#allocation2], 128
        %v557 = vld [vmem:[%s556] sm:$0xff]
        %v558 = vld [vmem:[%s556 + $0x8] sm:$0xff]
        %v559 = vld [vmem:[%s556 + $0x10] sm:$0xff]
        %v560 = vld [vmem:[%s556 + $0x18] sm:$0xff]
        %v561 = vmul.f32 %v557, %v550
        %v562 = vmul.f32 %v558, %v551
        %v563 = vmul.f32 %v559, %v552
        %v564 = vmul.f32 %v560, %v553
        %566 = vset.pattern.permute.xlu0 0
        %567 = vperm.xlu0 %566, %v554
        %v568 = vpop.permute.xlu0 %567
        %571 = vset.pattern.permute.xlu0 0
        %572 = vperm.xlu0 %571, %v555
        %v573 = vpop.permute.xlu0 %572
        %v575 = vadd.f32 %v568, %v561
        %v576 = vadd.f32 %v568, %v562
        %v577 = vadd.f32 %v573, %v563
        %v578 = vadd.f32 %v573, %v564
        %579 = vrot.lane.b32.xlu0 %v550, 17
        %v580 = vpop.permute.xlu0 %579
        %581 = vrot.lane.b32.xlu0 %v552, 17
        %v582 = vpop.permute.xlu0 %581
        %583 = vrot.lane.b32.xlu0 %v551, 17
        %v584 = vpop.permute.xlu0 %583
        %585 = vrot.lane.b32.xlu0 %v553, 17
        %v586 = vpop.permute.xlu0 %585
        %v587 = vlaneseq
        %v588 = vand.u32 %v587, 127
        %vm589 = vcmp.lt.s32.totalorder %v588, 17
        %v590 = vsel %vm589, %v580, %v584
        %v591 = vsel %vm589, %v582, %v586
        %v592 = vsel %vm589, %v584, %v580
        %v593 = vsel %vm589, %v586, %v582
        %v594 = vld [vmem:[#allocation2] sm:$0xff]
        %v595 = vld [vmem:[#allocation2 + $0x8] sm:$0xff]
        %v596 = vld [vmem:[#allocation2 + $0x10] sm:$0xff]
        %v597 = vld [vmem:[#allocation2 + $0x18] sm:$0xff]
        %v598 = vmul.f32 %v594, %v592
        %v599 = vmul.f32 %v595, %v590
        %v600 = vmul.f32 %v596, %v593
        %v601 = vmul.f32 %v597, %v591
        %v602 = vadd.f32 %v575, %v598
        %v603 = vadd.f32 %v576, %v599
        %v604 = vadd.f32 %v577, %v600
        %v605 = vadd.f32 %v578, %v601
        %606 = vrot.lane.b32.xlu0 %v550, 16
        %v607 = vpop.permute.xlu0 %606
        %608 = vrot.lane.b32.xlu0 %v552, 16
        %v609 = vpop.permute.xlu0 %608
        %610 = vrot.lane.b32.xlu0 %v551, 16
        %v611 = vpop.permute.xlu0 %610
        %612 = vrot.lane.b32.xlu0 %v553, 16
        %v613 = vpop.permute.xlu0 %612
        %vm614 = vcmp.lt.s32.totalorder %v588, 16
        %v615 = vsel %vm614, %v607, %v611
        %v616 = vsel %vm614, %v609, %v613
        %v617 = vsel %vm614, %v611, %v607
        %v618 = vsel %vm614, %v613, %v609
        %s619 = scalar_lea.vmem [#allocation2], 32
        %v620 = vld [vmem:[%s619] sm:$0xff]
        %v621 = vld [vmem:[%s619 + $0x8] sm:$0xff]
        %v622 = vld [vmem:[%s619 + $0x10] sm:$0xff]
        %v623 = vld [vmem:[%s619 + $0x18] sm:$0xff]
        %v624 = vmul.f32 %v620, %v617
        %v625 = vmul.f32 %v621, %v615
        %v626 = vmul.f32 %v622, %v618
        %v627 = vmul.f32 %v623, %v616
        %v628 = vadd.f32 %v602, %v624
        %v629 = vadd.f32 %v603, %v625
        %v630 = vadd.f32 %v604, %v626
        %v631 = vadd.f32 %v605, %v627
        %632 = vrot.lane.b32.xlu0 %v550, 15
        %v633 = vpop.permute.xlu0 %632
        %634 = vrot.lane.b32.xlu0 %v552, 15
        %v635 = vpop.permute.xlu0 %634
        %636 = vrot.lane.b32.xlu0 %v551, 15
        %v637 = vpop.permute.xlu0 %636
        %638 = vrot.lane.b32.xlu0 %v553, 15
        %v639 = vpop.permute.xlu0 %638
        %vm640 = vcmp.lt.s32.totalorder %v588, 15
        %v641 = vsel %vm640, %v633, %v637
        %v642 = vsel %vm640, %v635, %v639
        %v643 = vsel %vm640, %v637, %v633
        %v644 = vsel %vm640, %v639, %v635
        %s645 = scalar_lea.vmem [#allocation2], 64
        %v646 = vld [vmem:[%s645] sm:$0xff]
        %v647 = vld [vmem:[%s645 + $0x8] sm:$0xff]
        %v648 = vld [vmem:[%s645 + $0x10] sm:$0xff]
        %v649 = vld [vmem:[%s645 + $0x18] sm:$0xff]
        %v650 = vmul.f32 %v646, %v643
        %v651 = vmul.f32 %v647, %v641
        %v652 = vmul.f32 %v648, %v644
        %v653 = vmul.f32 %v649, %v642
        %v654 = vadd.f32 %v628, %v650
        %v655 = vadd.f32 %v629, %v651
        %v656 = vadd.f32 %v630, %v652
        %v657 = vadd.f32 %v631, %v653
        %658 = vrot.lane.b32.xlu0 %v550, 1
        %v659 = vpop.permute.xlu0 %658
        %660 = vrot.lane.b32.xlu0 %v552, 1
        %v661 = vpop.permute.xlu0 %660
        %662 = vrot.lane.b32.xlu0 %v551, 1
        %v663 = vpop.permute.xlu0 %662
        %664 = vrot.lane.b32.xlu0 %v553, 1
        %v665 = vpop.permute.xlu0 %664
        %vm666 = vcmp.lt.s32.totalorder %v588, 1
        %v667 = vsel %vm666, %v659, %v663
        %v668 = vsel %vm666, %v661, %v665
        %v669 = vsel %vm666, %v663, %v659
        %v670 = vsel %vm666, %v665, %v661
        %s671 = scalar_lea.vmem [#allocation2], 96
        %v672 = vld [vmem:[%s671] sm:$0xff]
        %v673 = vld [vmem:[%s671 + $0x8] sm:$0xff]
        %v674 = vld [vmem:[%s671 + $0x10] sm:$0xff]
        %v675 = vld [vmem:[%s671 + $0x18] sm:$0xff]
        %v676 = vmul.f32 %v672, %v669
        %v677 = vmul.f32 %v673, %v667
        %v678 = vmul.f32 %v674, %v670
        %v679 = vmul.f32 %v675, %v668
        %v680 = vadd.f32 %v654, %v676
        %v681 = vadd.f32 %v655, %v677
        %v682 = vadd.f32 %v656, %v678
        %v683 = vadd.f32 %v657, %v679
        %684 = vrot.lane.b32.xlu0 %v550, 127
        %v685 = vpop.permute.xlu0 %684
        %686 = vrot.lane.b32.xlu0 %v552, 127
        %v687 = vpop.permute.xlu0 %686
        %688 = vrot.lane.b32.xlu0 %v551, 127
        %v689 = vpop.permute.xlu0 %688
        %690 = vrot.lane.b32.xlu0 %v553, 127
        %v691 = vpop.permute.xlu0 %690
        %vm692 = vcmp.lt.s32.totalorder %v588, 127
        %v693 = vsel %vm692, %v685, %v689
        %v694 = vsel %vm692, %v687, %v691
        %v695 = vsel %vm692, %v689, %v685
        %v696 = vsel %vm692, %v691, %v687
        %s697 = scalar_lea.vmem [#allocation2], 160
        %v698 = vld [vmem:[%s697] sm:$0xff]
        %v699 = vld [vmem:[%s697 + $0x8] sm:$0xff]
        %v700 = vld [vmem:[%s697 + $0x10] sm:$0xff]
        %v701 = vld [vmem:[%s697 + $0x18] sm:$0xff]
        %v702 = vmul.f32 %v698, %v693
        %v703 = vmul.f32 %v699, %v695
        %v704 = vmul.f32 %v700, %v694
        %v705 = vmul.f32 %v701, %v696
        %v706 = vadd.f32 %v680, %v702
        %v707 = vadd.f32 %v681, %v703
        %v708 = vadd.f32 %v682, %v704
        %v709 = vadd.f32 %v683, %v705
        %710 = vrot.lane.b32.xlu0 %v550, 113
        %v711 = vpop.permute.xlu0 %710
        %712 = vrot.lane.b32.xlu0 %v552, 113
        %v713 = vpop.permute.xlu0 %712
        %714 = vrot.lane.b32.xlu0 %v551, 113
        %v715 = vpop.permute.xlu0 %714
        %716 = vrot.lane.b32.xlu0 %v553, 113
        %v717 = vpop.permute.xlu0 %716
        %vm718 = vcmp.lt.s32.totalorder %v588, 113
        %v719 = vsel %vm718, %v711, %v715
        %v720 = vsel %vm718, %v713, %v717
        %v721 = vsel %vm718, %v715, %v711
        %v722 = vsel %vm718, %v717, %v713
        %s723 = scalar_lea.vmem [#allocation2], 192
        %v724 = vld [vmem:[%s723] sm:$0xff]
        %v725 = vld [vmem:[%s723 + $0x8] sm:$0xff]
        %v726 = vld [vmem:[%s723 + $0x10] sm:$0xff]
        %v727 = vld [vmem:[%s723 + $0x18] sm:$0xff]
        %v728 = vmul.f32 %v724, %v719
        %v729 = vmul.f32 %v725, %v721
        %v730 = vmul.f32 %v726, %v720
        %v731 = vmul.f32 %v727, %v722
        %v732 = vadd.f32 %v706, %v728
        %v733 = vadd.f32 %v707, %v729
        %v734 = vadd.f32 %v708, %v730
        %v735 = vadd.f32 %v709, %v731
        %736 = vrot.lane.b32.xlu0 %v550, 112
        %v737 = vpop.permute.xlu0 %736
        %738 = vrot.lane.b32.xlu0 %v552, 112
        %v739 = vpop.permute.xlu0 %738
        %740 = vrot.lane.b32.xlu0 %v551, 112
        %v741 = vpop.permute.xlu0 %740
        %742 = vrot.lane.b32.xlu0 %v553, 112
        %v743 = vpop.permute.xlu0 %742
        %vm744 = vcmp.lt.s32.totalorder %v588, 112
        %v745 = vsel %vm744, %v737, %v741
        %v746 = vsel %vm744, %v739, %v743
        %v747 = vsel %vm744, %v741, %v737
        %v748 = vsel %vm744, %v743, %v739
        %s749 = scalar_lea.vmem [#allocation2], 224
        %v750 = vld [vmem:[%s749] sm:$0xff]
        %v751 = vld [vmem:[%s749 + $0x8] sm:$0xff]
        %v752 = vld [vmem:[%s749 + $0x10] sm:$0xff]
        %v753 = vld [vmem:[%s749 + $0x18] sm:$0xff]
        %v754 = vmul.f32 %v750, %v745
        %v755 = vmul.f32 %v751, %v747
        %v756 = vmul.f32 %v752, %v746
        %v757 = vmul.f32 %v753, %v748
        %v758 = vadd.f32 %v732, %v754
        %v759 = vadd.f32 %v733, %v755
        %v760 = vadd.f32 %v734, %v756
        %v761 = vadd.f32 %v735, %v757
        %762 = vrot.lane.b32.xlu0 %v550, 111
        %v763 = vpop.permute.xlu0 %762
        %764 = vrot.lane.b32.xlu0 %v552, 111
        %v765 = vpop.permute.xlu0 %764
        %766 = vrot.lane.b32.xlu0 %v551, 111
        %v767 = vpop.permute.xlu0 %766
        %768 = vrot.lane.b32.xlu0 %v553, 111
        %v769 = vpop.permute.xlu0 %768
        %vm770 = vcmp.lt.s32.totalorder %v588, 111
        %v771 = vsel %vm770, %v763, %v767
        %v772 = vsel %vm770, %v765, %v769
        %v773 = vsel %vm770, %v767, %v763
        %v774 = vsel %vm770, %v769, %v765
        %s775 = scalar_lea.vmem [#allocation2], 256
        %v776 = vld [vmem:[%s775] sm:$0xff]
        %v777 = vld [vmem:[%s775 + $0x8] sm:$0xff]
        %v778 = vld [vmem:[%s775 + $0x10] sm:$0xff]
        %v779 = vld [vmem:[%s775 + $0x18] sm:$0xff]
        %v780 = vmul.f32 %v776, %v771
        %v781 = vmul.f32 %v777, %v773
        %v782 = vmul.f32 %v778, %v772
        %v783 = vmul.f32 %v779, %v774
        %v784 = vadd.f32 %v758, %v780
        %v785 = vadd.f32 %v759, %v781
        %v786 = vadd.f32 %v760, %v782
        %v787 = vadd.f32 %v761, %v783
        %v788 = vmul.f32 %v784, 0.5
        %v789 = vmul.f32 %v785, 0.5
        %v790 = vmul.f32 %v786, 0.5
        %v791 = vmul.f32 %v787, 0.5
        %v792 = vmul.f32 %v784, 0.70710677
        %v793 = vmul.f32 %v785, 0.70710677
        %v794 = vmul.f32 %v786, 0.70710677
        %v795 = vmul.f32 %v787, 0.70710677
        %v796 = vand.u32 2147483647, %v792
        %v797 = vand.u32 2147483647, %v793
        %v798 = vand.u32 2147483647, %v794
        %v799 = vand.u32 2147483647, %v795
        %v800 = vmul.f32 %v796, 0.3275911
        %v801 = vmul.f32 %v797, 0.3275911
        %v802 = vmul.f32 %v798, 0.3275911
        %v803 = vmul.f32 %v799, 0.3275911
        %v804 = vadd.f32 %v800, 1.0
        %v805 = vadd.f32 %v801, 1.0
        %v806 = vadd.f32 %v802, 1.0
        %v807 = vadd.f32 %v803, 1.0
        %v808 = vrcp.pop %v804
        %v809 = vrcp.pop %v805
        %v810 = vrcp.pop %v806
        %v811 = vrcp.pop %v807
        %v812 = vmul.f32 %v808, 1.0614054
        %v813 = vmul.f32 %v809, 1.0614054
        %v814 = vmul.f32 %v810, 1.0614054
        %v815 = vmul.f32 %v811, 1.0614054
        %v816 = vadd.f32 %v812, -1.4531521
        %v817 = vadd.f32 %v813, -1.4531521
        %v818 = vadd.f32 %v814, -1.4531521
        %v819 = vadd.f32 %v815, -1.4531521
        %v820 = vmul.f32 %v816, %v808
        %v821 = vmul.f32 %v817, %v809
        %v822 = vmul.f32 %v818, %v810
        %v823 = vmul.f32 %v819, %v811
        %v824 = vadd.f32 %v820, 1.4214138
        %v825 = vadd.f32 %v821, 1.4214138
        %v826 = vadd.f32 %v822, 1.4214138
        %v827 = vadd.f32 %v823, 1.4214138
        %v828 = vmul.f32 %v824, %v808
        %v829 = vmul.f32 %v825, %v809
        %v830 = vmul.f32 %v826, %v810
        %v831 = vmul.f32 %v827, %v811
        %v832 = vadd.f32 %v828, -0.28449672
        %v833 = vadd.f32 %v829, -0.28449672
        %v834 = vadd.f32 %v830, -0.28449672
        %v835 = vadd.f32 %v831, -0.28449672
        %v836 = vmul.f32 %v832, %v808
        %v837 = vmul.f32 %v833, %v809
        %v838 = vmul.f32 %v834, %v810
        %v839 = vmul.f32 %v835, %v811
        %v840 = vadd.f32 %v836, 0.2548296
        %v841 = vadd.f32 %v837, 0.2548296
        %v842 = vadd.f32 %v838, 0.2548296
        %v843 = vadd.f32 %v839, 0.2548296
        %v844 = vmul.f32 %v840, %v808
        %v845 = vmul.f32 %v841, %v809
        %v846 = vmul.f32 %v842, %v810
        %v847 = vmul.f32 %v843, %v811
        %v848 = vsub.f32 0.0, %v796
        %v849 = vsub.f32 0.0, %v797
        %v850 = vsub.f32 0.0, %v798
        %v851 = vsub.f32 0.0, %v799
        %v852 = vmul.f32 %v848, %v796
        %v853 = vmul.f32 %v849, %v797
        %v854 = vmul.f32 %v850, %v798
        %v855 = vmul.f32 %v851, %v799
        %v856 = vmul.f32 %v852, 1.442695
        %v857 = vpow.pop %v856
        %v858 = vmul.f32 %v853, 1.442695
        %v859 = vpow.pop %v858
        %v860 = vmul.f32 %v854, 1.442695
        %v861 = vpow.pop %v860
        %v862 = vmul.f32 %v855, 1.442695
        %v863 = vpow.pop %v862
        %v864 = vmul.f32 %v844, %v857
        %v865 = vmul.f32 %v845, %v859
        %v866 = vmul.f32 %v846, %v861
        %v867 = vmul.f32 %v847, %v863
        %v868 = vsub.f32 1.0, %v864
        %v869 = vsub.f32 1.0, %v865
        %v870 = vsub.f32 1.0, %v866
        %v871 = vsub.f32 1.0, %v867
        %vm872 = vcmp.ge.f32.partialorder %v792, 0.0
        %vm873 = vcmp.ge.f32.partialorder %v793, 0.0
        %vm874 = vcmp.ge.f32.partialorder %v794, 0.0
        %vm875 = vcmp.ge.f32.partialorder %v795, 0.0
        %v876 = vsub.f32 0.0, %v868
        %v877 = vsub.f32 0.0, %v869
        %v878 = vsub.f32 0.0, %v870
        %v879 = vsub.f32 0.0, %v871
        %v880 = vsel %vm872, %v868, %v876
        %v881 = vsel %vm873, %v869, %v877
        %v882 = vsel %vm874, %v870, %v878
        %v883 = vsel %vm875, %v871, %v879
        %v884 = vadd.f32 %v880, 1.0
        %v885 = vadd.f32 %v881, 1.0
        %v886 = vadd.f32 %v882, 1.0
        %v887 = vadd.f32 %v883, 1.0
        %v888 = vmul.f32 %v788, %v884
        %v889 = vmul.f32 %v789, %v885
        %v890 = vmul.f32 %v790, %v886
        %v891 = vmul.f32 %v791, %v887
        %v892 = vadd.f32 %v550, %v888
        %v893 = vadd.f32 %v551, %v889
        %v894 = vadd.f32 %v552, %v890
        %v895 = vadd.f32 %v553, %v891
        %v896 = vld [vmem:[%s5] sm:$0xf]
        %v897 = vld [vmem:[%s6] sm:$0xf]
        %899 = vset.pattern.permute.xlu0 0
        %900 = vperm.xlu0 %899, %v897
        %v901 = vpop.permute.xlu0 %900
        %vm903 = vcmask 130048
        %v905 = vsel %vm903, %v896, 0
        %907 = vmatpush.msra.mxu0 0.0
        %908 = vmatpush.msra.mxu0 0.0
        %909 = vmatpush.msra.mxu0 0.0
        %910 = vmatpush.msra.mxu0 0.0
        %911 = vmatpush.msra.mxu0 0.0
        %912 = vmatpush.msra.mxu0 0.0
        %913 = vmatpush.msra.mxu0 0.0
        %914 = vmatpush.msra.mxu0 0.0
        %915 = vmatpush.msra.mxu0 0.0
        %916 = vmatpush.msra.mxu0 0.0
        %917 = vmatpush.msra.mxu0 0.0
        %918 = vmatpush.msra.mxu0 0.0
        %919 = vmatpush.msra.mxu0 0.0
        %920 = vmatpush.msra.mxu0 0.0
        %921 = vmatpush.msra.mxu0 %v894
        %922 = vmatpush.msra.mxu0 %v892
        %923 = vmatmul.f32.gmra.mxu0 %v905
        %v924 = vpop.f32.mrf.mxu0
        %v925 = vadd.f32 %v901, %v924
        %926 = vdwg.mxu0
        %927 = vmatpush.msra.mxu0 0.0
        %928 = vmatpush.msra.mxu0 0.0
        %929 = vmatpush.msra.mxu0 0.0
        %930 = vmatpush.msra.mxu0 0.0
        %931 = vmatpush.msra.mxu0 0.0
        %932 = vmatpush.msra.mxu0 0.0
        %933 = vmatpush.msra.mxu0 0.0
        %934 = vmatpush.msra.mxu0 0.0
        %935 = vmatpush.msra.mxu0 0.0
        %936 = vmatpush.msra.mxu0 0.0
        %937 = vmatpush.msra.mxu0 0.0
        %938 = vmatpush.msra.mxu0 0.0
        %939 = vmatpush.msra.mxu0 0.0
        %940 = vmatpush.msra.mxu0 0.0
        %941 = vmatpush.msra.mxu0 %v895
        %942 = vmatpush.msra.mxu0 %v893
        %943 = vmatmul.f32.gmra.mxu0 %v905
        %v944 = vpop.f32.mrf.mxu0
        %v945 = vadd.f32 %v901, %v944
        %946 = vdwg.mxu0
        %v949 = vrot.slane %v945, 4
        %v950 = vsel %vm301, %v925, %v949
        %952 = vst [vmem:[%s288] sm:$0xff] %v950
        %s953 = sand.u32 %s182, 1
        %s954 = scalar_lea.sflag [#allocation4], %s953
        %s955 = sand.u32 %s182, 1
        %s956 = smul.addr %s955, 8
        %s957 = scalar_lea.vmem [#allocation5], %s956
        // Predicated region
        $region53: #{tpu_custom_call.1} parent=47 // pred_check
          %p958 = pneg %p192
        $region54: #{tpu_custom_call.1} parent=47 // pred_check_branch
          %960 = sbr.rel (%p958) target = $region56
        $region55: #{tpu_custom_call.1} parent=47 // pred_region
          %962 = vsyncadd %s954, 0
          %s963 = smul.addr %s22, 2
          %s964 = smul.addr %s963, 4
          %s965 = scalar_lea.hbm %s7, %s964
          %s967 = sshll.u32 %s957, 4
          %s968 = int_to_ptr.vmem [resolvable:$true] %s967
          %s969 = sshll.u32 %s965, 4
          %s970 = int_to_ptr.hbm [resolvable:$true] %s969
          %972 = dma.vmem_to_hbm [thread:$0]  %s968, 128, %s970, %s954
        $region56: #{tpu_custom_call.1} parent=47 // pred_fallthru
          _
      $region48: #{tpu_custom_call.1} parent=5 // pred_fallthru
        _
      %p973 = scmp.le.s32.totalorder 2, %s17
      // Predicated region
      $region57: #{tpu_custom_call.1} parent=5 // pred_check
        %p974 = pneg %p973
      $region58: #{tpu_custom_call.1} parent=5 // pred_check_branch
        %976 = sbr.rel (%p974) target = $region60
      $region59: #{tpu_custom_call.1} parent=5 // pred_region
        %s977 = ssub.s32 %s17, 2
        // Predicated region
        $region61: #{tpu_custom_call.1} parent=59 // pred_check
          %p978 = pneg %p198
        $region62: #{tpu_custom_call.1} parent=59 // pred_check_branch
          %980 = sbr.rel (%p978) target = $region64
        $region63: #{tpu_custom_call.1} parent=59 // pred_region
          %s981 = sand.u32 %s183, 1
          %s982 = scalar_lea.sflag [#allocation4], %s981
          %s983 = sand.u32 %s183, 1
          %s984 = smul.addr %s983, 8
          %s985 = scalar_lea.vmem [#allocation5], %s984
          %987 = dma.done %s982, 128
        $region64: #{tpu_custom_call.1} parent=59 // pred_fallthru
          _
      $region60: #{tpu_custom_call.1} parent=5 // pred_fallthru
        _
    $region6: #{tpu_custom_call.1} parent=1 // loop_footer
      %s21 = sadd.s32 1, %s17
    $region7: #{tpu_custom_call.1} parent=1 // loop_footer_branch
      %16 = sbr.rel target = $region3
    $region8: #{tpu_custom_call.1} parent=1 // loop_exit
      _
    %988 = vsyncpa [#allocation3], 1
    %s989 = scalar_lea.sflag [#allocation3], 1
    %990 = vsyncpa %s989, 1
    %991 = vsyncpa [#allocation4], 1
    %s992 = scalar_lea.sflag [#allocation4], 1
    %993 = vsyncpa %s992, 1

</llo_original>
